<compile_context>
chip_gen: v5e
topology: v5e:2x2
jax: 0.10.0
libtpu: 0.0.40
codegen_flags: <defaults>
</compile_context>

<pallas_src>
import functools
import math

import jax
import jax.numpy as jnp
import numpy as np
from jax import lax
from jax.experimental import pallas as pl
from jax.experimental.pallas import tpu as pltpu

_INT_MIN = -2147483648
_INT_MAX = 2147483647


def _round_up(x, m):
    return ((x + m - 1) // m) * m


def _vmem_budget_bytes():
    """~75% of this chip's physical VMEM (≈48 MiB on v7x, ≈96 MiB on v5e/v6e)."""
    phys = 64 << 20  # conservative fallback (v7x-sized)
    try:
        cap = getattr(pltpu.get_tpu_info(), "vmem_capacity_bytes", None)
        if cap:
            phys = int(cap)
    except Exception:
        pass
    return max(16 << 20, (phys * 3) // 4)


def _float_key(x32):
    """Monotone (order-preserving) int32 key of a float32 array's bit pattern."""
    b = pltpu.bitcast(x32, jnp.int32)
    return jnp.where(b >= 0, b, jnp.int32(_INT_MIN) - b)


def _key_to_float(key):
    """Inverse of _float_key (exact for keys of actual data values)."""
    b = jnp.where(key >= 0, key, jnp.int32(_INT_MIN) - key)
    return pltpu.bitcast(b, jnp.float32)


def _midpoint(lo, hi):
    """Overflow-safe floor((lo + hi) / 2) for int32 lo <= hi."""
    return (lo >> 1) + (hi >> 1) + (lo & hi & 1)


# ---------------------------------------------------------------------------
# Kernel 1: column-wise ES for (N, M) inputs (dim 0 = reduction axis).
# ---------------------------------------------------------------------------
def _es_columns_kernel(t_ref, x_ref, o_ref, key_ref, *, k):
    """Expected shortfall over dim 0 of one (N, TM) lane tile.

    t_ref   : SMEM (1,)      scalar target (0 if target was a tensor)
    x_ref   : VMEM (N, TM)   samples tile, native dtype
    o_ref   : VMEM (1, TM)   float32 output tile
    key_ref : VMEM (N, TM)   int32 scratch: monotone order keys
    """
    # Selecting the k smallest is translation-invariant, so rank raw x and
    # fold the target into the epilogue (no shifted-samples scratch, no
    # per-pass subtraction).
    key_ref[...] = _float_key(x_ref[...].astype(jnp.float32))

    kf = jnp.float32(k)
    tm = o_ref.shape[-1]

    def body(_, carry):
        lo, hi = carry                                     # (1, TM) int32
        mid = _midpoint(lo, hi)
        # float32 count is exact for N < 2^24 rows.
        cnt = jnp.sum((key_ref[...] <= mid).astype(jnp.float32),
                      axis=0, keepdims=True)               # (1, TM)
        ge = cnt >= kf
        return jnp.where(ge, lo, mid), jnp.where(ge, mid, hi)

    lo0 = jnp.full((1, tm), _INT_MIN, dtype=jnp.int32)
    hi0 = jnp.full((1, tm), _INT_MAX, dtype=jnp.int32)
    # Invariant: count(key <= lo) < k <= count(key <= hi).  32 halvings of the
    # full int32 range pin hi to the exact key of the k-th smallest element
    # of every column.
    _, v_key = lax.fori_loop(0, 32, body, (lo0, hi0))

    xv = x_ref[...].astype(jnp.float32)
    key = key_ref[...]
    cnt_less = jnp.sum((key < v_key).astype(jnp.float32), axis=0, keepdims=True)
    sum_less = jnp.sum(jnp.where(key < v_key, xv, 0.0), axis=0, keepdims=True)
    v_val = _key_to_float(v_key)                           # k-th smallest value
    total = sum_less + (kf - cnt_less) * v_val             # exact tie handling
    o_ref[...] = t_ref[0] - total * (1.0 / float(k))


def _es_columns_call(x2d, t_scalar, k):
    n, m = x2d.shape
    itemsize = jnp.dtype(x2d.dtype).itemsize
    budget = _vmem_budget_bytes()

    def tile_bytes(tm):
        # double-buffered native-dtype input tile + int32 key scratch + slack
        return n * tm * (2 * itemsize + 4) + (1 << 20)

    if m < 128:
        tm = m                         # full-dims lane block, no padding needed
    else:
        m_pad128 = _round_up(m, 128)
        tm = min(1024, m_pad128)
        while tm > 128 and tile_bytes(tm) > budget:
            tm -= 128
        # Give v7x's two TensorCores at least two lane tiles to split.
        if -(-m // tm) < 2:
            tm = max(128, _round_up(m_pad128 // 2, 128))
    # TODO(synk): for N so large that even a 128-lane tile exceeds the VMEM
    # budget, a row-blocked bisection (cross-block count accumulation) would
    # be needed; not implemented here.

    grid = (-(-m // tm),)
    vmem_limit = int(min(budget, max(32 << 20, tile_bytes(tm) + (8 << 20))))

    out = pl.pallas_call(
        functools.partial(_es_columns_kernel, k=k),
        out_shape=jax.ShapeDtypeStruct((1, m), jnp.float32),
        grid=grid,
        in_specs=[
            pl.BlockSpec(memory_space=pltpu.MemorySpace.SMEM),   # target scalar
            pl.BlockSpec((n, tm), lambda j: (0, j)),             # samples tile
        ],
        out_specs=pl.BlockSpec((1, tm), lambda j: (0, j)),
        scratch_shapes=[pltpu.VMEM((n, tm), jnp.int32)],         # order keys
        compiler_params=pltpu.CompilerParams(
            dimension_semantics=("parallel",),
            vmem_limit_bytes=vmem_limit,
        ),
        cost_estimate=pl.CostEstimate(
            flops=int(105 * n * m),
            transcendentals=0,
            bytes_accessed=int(n * m * itemsize + 4 * m + 4),
        ),
    )(t_scalar, x2d)
    return out[0]


# ---------------------------------------------------------------------------
# Kernel 2: lane-parallel ES for 1-D inputs (the common pfhedge case, M == 1).
# ---------------------------------------------------------------------------
def _es_1d_kernel(t_ref, x_ref, o_ref, key_ref, *, k):
    """t_ref: SMEM (1,); x_ref: VMEM (R,128) f32 padded with +inf; o_ref: (1,1)."""
    key_ref[...] = _float_key(x_ref[...])
    kf = jnp.float32(k)

    def body(_, carry):
        lo, hi = carry                                     # (1, 1) int32
        m2 = _midpoint(lo, hi)
        m1 = _midpoint(lo, m2)
        m3 = _midpoint(m2, hi)
        # Three independent counts per step (2 key bits / iteration) halve the
        # serial compare->reduce->select chain versus plain binary bisection.
        key = key_ref[...]
        c1 = jnp.sum((key <= m1).astype(jnp.float32), keepdims=True)
        c2 = jnp.sum((key <= m2).astype(jnp.float32), keepdims=True)
        c3 = jnp.sum((key <= m3).astype(jnp.float32), keepdims=True)
        g1, g2, g3 = c1 >= kf, c2 >= kf, c3 >= kf
        new_lo = jnp.where(g1, lo, jnp.where(g2, m1, jnp.where(g3, m2, m3)))
        new_hi = jnp.where(g1, m1, jnp.where(g2, m2, jnp.where(g3, m3, hi)))
        return new_lo, new_hi

    lo0 = jnp.full((1, 1), _INT_MIN, dtype=jnp.int32)
    hi0 = jnp.full((1, 1), _INT_MAX, dtype=jnp.int32)
    # Invariant: count(key <= lo) < k <= count(key <= hi); 16 quaternary steps
    # cover the full int32 range, so hi ends as the exact k-th smallest key.
    _, v_key = lax.fori_loop(0, 16, body, (lo0, hi0))

    x = x_ref[...]
    key = key_ref[...]
    cnt_less = jnp.sum((key < v_key).astype(jnp.float32), keepdims=True)
    sum_less = jnp.sum(jnp.where(key < v_key, x, 0.0), keepdims=True)
    v_val = _key_to_float(v_key)                           # k-th smallest value
    total = sum_less + (kf - cnt_less) * v_val             # exact tie handling
    o_ref[...] = t_ref[0] - total * (1.0 / float(k))


def _es_1d_call(x32, t_scalar, k):
    n = x32.shape[0]
    r = _round_up(max(1, -(-n // 128)), 8)
    n_pad = r * 128
    x_p = jnp.pad(x32, (0, n_pad - n), constant_values=jnp.inf).reshape(r, 128)

    budget = _vmem_budget_bytes()
    vmem_limit = int(min(budget, max(32 << 20, 2 * n_pad * 4 + (4 << 20))))

    out = pl.pallas_call(
        functools.partial(_es_1d_kernel, k=k),
        out_shape=jax.ShapeDtypeStruct((1, 1), jnp.float32),
        in_specs=[
            pl.BlockSpec(memory_space=pltpu.MemorySpace.SMEM),   # target scalar
            pl.BlockSpec(memory_space=pltpu.MemorySpace.VMEM),   # (R, 128) slab
        ],
        out_specs=pl.BlockSpec(memory_space=pltpu.MemorySpace.VMEM),
        scratch_shapes=[pltpu.VMEM((r, 128), jnp.int32)],        # order keys
        compiler_params=pltpu.CompilerParams(vmem_limit_bytes=vmem_limit),
        cost_estimate=pl.CostEstimate(
            flops=int(16 * 12 * n_pad + 8 * n_pad),
            transcendentals=0,
            bytes_accessed=int(n_pad * 4 + 8),
        ),
    )(t_scalar, x_p)
    return out[0, 0]


# ---------------------------------------------------------------------------
# Public wrapper / module
# ---------------------------------------------------------------------------
def expected_shortfall_pallas(x, target=0.0, p=0.1):
    """Equivalent of ExpectedShortfall(p).forward(x, target) with dim=0."""
    x = jnp.asarray(x)
    if x.ndim == 0:
        raise ValueError("input must have at least one dimension")
    orig_shape = x.shape
    orig_dtype = x.dtype
    n = orig_shape[0]
    k = max(1, int(math.ceil(p * n)))

    t_arr = jnp.asarray(target, dtype=jnp.float32)
    if t_arr.ndim > 0:
        # Non-scalar target: fold the (broadcasting) subtraction in the wrapper.
        x = x.astype(jnp.float32) - t_arr
        t_scalar = jnp.zeros((1,), jnp.float32)
    else:
        t_scalar = t_arr.reshape(1)

    if x.ndim == 1:
        out = _es_1d_call(x.astype(jnp.float32), t_scalar, k)
        return out.astype(orig_dtype)

    m = int(np.prod(orig_shape[1:]))
    out = _es_columns_call(x.reshape(n, m), t_scalar, k)
    return out.reshape(orig_shape[1:]).astype(orig_dtype)


class ExpectedShortfall:
    """JAX/Pallas counterpart of pfhedge.nn.ExpectedShortfall (forward + cash)."""

    def __init__(self, p: float = 0.1):
        if not 0 < p <= 1:
            raise ValueError("The quantile level should satisfy 0 < p <= 1.")
        self.p = p

    def __call__(self, input, target=0.0):
        return expected_shortfall_pallas(input, target=target, p=self.p)

    def forward(self, input, target=0.0):
        return self(input, target=target)

    def cash(self, input, target=0.0):
        # pfhedge: ES.cash(input, target) = -ES(input - target)
        return -self(input, target=target)

    def extra_repr(self) -> str:
        return str(self.p)


def _reference(x, target=0.0, p=0.1):
    """Pure-JAX reference: -(mean of k smallest along dim 0)."""
    pl_ = jnp.asarray(x, jnp.float32) - jnp.asarray(target, jnp.float32)
    n = pl_.shape[0]
    k = max(1, int(math.ceil(p * n)))
    smallest = jnp.sort(pl_, axis=0)[:k]
    return -jnp.mean(smallest, axis=0)


if __name__ == "__main__":
    key = jax.random.PRNGKey(0)
    k1, k2, k3 = jax.random.split(key, 3)

    loss_fn = ExpectedShortfall(p=0.1)

    # Case 1: small 2-D input (N=16 paths, M=8 instruments) -> output shape (8,)
    x2d = jax.random.normal(k1, (16, 8), dtype=jnp.float32)
    out2d = jax.block_until_ready(loss_fn(x2d, target=0.5))
    np.testing.assert_allclose(np.asarray(out2d),
                               np.asarray(_reference(x2d, target=0.5, p=0.1)),
                               rtol=1e-5, atol=1e-5)

    # Case 2: 1-D input (N=32 paths) -> scalar (lane-parallel 4-ary bisection)
    x1d = jax.random.normal(k2, (32,), dtype=jnp.float32)
    out1d = jax.block_until_ready(loss_fn(x1d))
    np.testing.assert_allclose(np.asarray(out1d),
                               np.asarray(_reference(x1d, p=0.1)),
                               rtol=1e-5, atol=1e-5)

    # Case 3: 1-D input with heavy ties at the quantile boundary.
    x_tie = jnp.floor(x1d * 2.0) / 2.0
    out_tie = jax.block_until_ready(loss_fn(x_tie, target=0.25))
    np.testing.assert_allclose(np.asarray(out_tie),
                               np.asarray(_reference(x_tie, target=0.25, p=0.25 * 0 + 0.1)),
                               rtol=1e-5, atol=1e-5)

    # Case 4: multi-tile column grid with a partial (non-multiple-of-128)
    # trailing lane tile and a different quantile level.
    loss25 = ExpectedShortfall(p=0.25)
    x_wide = jax.random.normal(k3, (64, 300), dtype=jnp.float32)
    out_wide = jax.block_until_ready(loss25(x_wide, target=0.1))
    np.testing.assert_allclose(np.asarray(out_wide),
                               np.asarray(_reference(x_wide, target=0.1, p=0.25)),
                               rtol=1e-5, atol=1e-5)

    # Case 5: bf16 input DMA'd at native dtype (cast happens inside the kernel).
    x_bf16 = jax.random.normal(k1, (32, 256), dtype=jnp.float32).astype(jnp.bfloat16)
    out_bf16 = jax.block_until_ready(loss_fn(x_bf16))
    np.testing.assert_allclose(np.asarray(jnp.asarray(out_bf16, jnp.float32)),
                               np.asarray(_reference(x_bf16, p=0.1)),
                               rtol=2e-2, atol=2e-2)

    print("KERNEL_OK")
</pallas_src>

<mosaic_0001>
module attributes {stable_mosaic.version = 11 : i64} {
  func.func @_es_columns_kernel(%arg0: i32, %arg1: memref<1xf32, #tpu.memory_space<smem>>, %arg2: memref<16x8xf32, #tpu.memory_space<vmem>>, %arg3: memref<1x8xf32, #tpu.memory_space<vmem>>, %arg4: memref<16x8xi32, #tpu.memory_space<vmem>>) attributes {dimension_semantics = [#tpu.dimension_semantics<parallel>], iteration_bounds = array<i64: 1>, scalar_prefetch = 0 : i64, scratch_operands = 1 : i64, tpu.core_type = #tpu.core_type<tc>, window_params = [{transform_indices = @transform_0, window_bounds = array<i64: 1>}, {transform_indices = @transform_1, window_bounds = array<i64: 16, 8>}, {transform_indices = @transform_2, window_bounds = array<i64: 1, 8>}]} {
    %c0 = arith.constant 0 : index
    %c0_0 = arith.constant 0 : index
    %0 = vector.load %arg2[%c0, %c0_0] : memref<16x8xf32, #tpu.memory_space<vmem>>, vector<16x8xf32>
    %1 = tpu.bitcast %0 : vector<16x8xf32> -> vector<16x8xi32>
    %c0_i32 = arith.constant 0 : i32
    %2 = vector.broadcast %c0_i32 : i32 to vector<16x8xi32>
    %3 = arith.cmpi sge, %1, %2 : vector<16x8xi32>
    %c-2147483648_i32 = arith.constant -2147483648 : i32
    %4 = vector.broadcast %c-2147483648_i32 : i32 to vector<16x8xi32>
    %5 = arith.subi %4, %1 : vector<16x8xi32>
    %6 = arith.select %3, %1, %5 : vector<16x8xi1>, vector<16x8xi32>
    %c0_1 = arith.constant 0 : index
    %c0_2 = arith.constant 0 : index
    %7 = vector.load %arg4[%c0_1, %c0_2] : memref<16x8xi32, #tpu.memory_space<vmem>>, vector<16x8xi32>
    tpu.vector_store %arg4[%c0_1, %c0_2], %6 {strides = array<i32>} : memref<16x8xi32, #tpu.memory_space<vmem>>, vector<16x8xi32>,
    %c-2147483648_i32_3 = arith.constant -2147483648 : i32
    %8 = vector.broadcast %c-2147483648_i32_3 : i32 to vector<1x8xi32>
    %c2147483647_i32 = arith.constant 2147483647 : i32
    %9 = vector.broadcast %c2147483647_i32 : i32 to vector<1x8xi32>
    %cst = arith.constant 2.000000e+00 : f32
    %c0_i32_4 = arith.constant 0 : i32
    %c32_i32 = arith.constant 32 : i32
    %10 = arith.addi %c0_i32_4, %c32_i32 : i32
    %c1_i32 = arith.constant 1 : i32
    %11:2 = scf.for %arg5 = %c0_i32_4 to %10 step %c1_i32 iter_args(%arg6 = %8, %arg7 = %9) -> (vector<1x8xi32>, vector<1x8xi32>)  : i32 {
      %c1_i32_19 = arith.constant 1 : i32
      %42 = vector.broadcast %c1_i32_19 : i32 to vector<1x8xi32>
      %43 = arith.shrsi %arg6, %42 : vector<1x8xi32>
      %c1_i32_20 = arith.constant 1 : i32
      %44 = vector.broadcast %c1_i32_20 : i32 to vector<1x8xi32>
      %45 = arith.shrsi %arg7, %44 : vector<1x8xi32>
      %46 = arith.addi %43, %45 : vector<1x8xi32>
      %47 = arith.andi %arg6, %arg7 : vector<1x8xi32>
      %c1_i32_21 = arith.constant 1 : i32
      %48 = vector.broadcast %c1_i32_21 : i32 to vector<1x8xi32>
      %49 = arith.andi %47, %48 : vector<1x8xi32>
      %50 = arith.addi %46, %49 : vector<1x8xi32>
      %c0_22 = arith.constant 0 : index
      %c0_23 = arith.constant 0 : index
      %51 = vector.load %arg4[%c0_22, %c0_23] : memref<16x8xi32, #tpu.memory_space<vmem>>, vector<16x8xi32>
      %52 = vector.broadcast %50 : vector<1x8xi32> to vector<16x8xi32>
      %53 = arith.cmpi sle, %51, %52 : vector<16x8xi32>
      %54 = arith.extui %53 : vector<16x8xi1> to vector<16x8xi32>
      %55 = arith.sitofp %54 : vector<16x8xi32> to vector<16x8xf32>
      %cst_24 = arith.constant dense<0.000000e+00> : vector<8xf32>
      %56 = vector.multi_reduction <add>, %55, %cst_24 [0] : vector<16x8xf32> to vector<8xf32>
      %57 = vector.shape_cast %56 : vector<8xf32> to vector<1x8xf32>
      %58 = vector.broadcast %cst : f32 to vector<1x8xf32>
      %59 = arith.cmpf oge, %57, %58 : vector<1x8xf32>
      %60 = arith.select %59, %arg6, %50 : vector<1x8xi1>, vector<1x8xi32>
      %61 = arith.select %59, %50, %arg7 : vector<1x8xi1>, vector<1x8xi32>
      scf.yield %60, %61 : vector<1x8xi32>, vector<1x8xi32>
    }
    %c0_5 = arith.constant 0 : index
    %c0_6 = arith.constant 0 : index
    %12 = vector.load %arg2[%c0_5, %c0_6] : memref<16x8xf32, #tpu.memory_space<vmem>>, vector<16x8xf32>
    %c0_7 = arith.constant 0 : index
    %c0_8 = arith.constant 0 : index
    %13 = vector.load %arg4[%c0_7, %c0_8] : memref<16x8xi32, #tpu.memory_space<vmem>>, vector<16x8xi32>
    %14 = vector.broadcast %11#1 : vector<1x8xi32> to vector<16x8xi32>
    %15 = arith.cmpi slt, %13, %14 : vector<16x8xi32>
    %16 = arith.extui %15 : vector<16x8xi1> to vector<16x8xi32>
    %17 = arith.sitofp %16 : vector<16x8xi32> to vector<16x8xf32>
    %cst_9 = arith.constant dense<0.000000e+00> : vector<8xf32>
    %18 = vector.multi_reduction <add>, %17, %cst_9 [0] : vector<16x8xf32> to vector<8xf32>
    %19 = vector.shape_cast %18 : vector<8xf32> to vector<1x8xf32>
    %20 = vector.broadcast %11#1 : vector<1x8xi32> to vector<16x8xi32>
    %21 = arith.cmpi slt, %13, %20 : vector<16x8xi32>
    %cst_10 = arith.constant 0.000000e+00 : f32
    %22 = vector.broadcast %cst_10 : f32 to vector<16x8xf32>
    %23 = arith.select %21, %12, %22 : vector<16x8xi1>, vector<16x8xf32>
    %cst_11 = arith.constant dense<0.000000e+00> : vector<8xf32>
    %24 = vector.multi_reduction <add>, %23, %cst_11 [0] : vector<16x8xf32> to vector<8xf32>
    %25 = vector.shape_cast %24 : vector<8xf32> to vector<1x8xf32>
    %c0_i32_12 = arith.constant 0 : i32
    %26 = vector.broadcast %c0_i32_12 : i32 to vector<1x8xi32>
    %27 = arith.cmpi sge, %11#1, %26 : vector<1x8xi32>
    %c-2147483648_i32_13 = arith.constant -2147483648 : i32
    %28 = vector.broadcast %c-2147483648_i32_13 : i32 to vector<1x8xi32>
    %29 = arith.subi %28, %11#1 : vector<1x8xi32>
    %30 = arith.select %27, %11#1, %29 : vector<1x8xi1>, vector<1x8xi32>
    %31 = tpu.bitcast %30 : vector<1x8xi32> -> vector<1x8xf32>
    %cst_14 = arith.constant 2.000000e+00 : f32
    %32 = vector.broadcast %cst_14 : f32 to vector<1x8xf32>
    %33 = arith.subf %32, %19 : vector<1x8xf32>
    %34 = arith.mulf %33, %31 : vector<1x8xf32>
    %35 = arith.addf %25, %34 : vector<1x8xf32>
    %c0_15 = arith.constant 0 : index
    %36 = memref.load %arg1[%c0_15] : memref<1xf32, #tpu.memory_space<smem>>
    %cst_16 = arith.constant 5.000000e-01 : f32
    %37 = vector.broadcast %cst_16 : f32 to vector<1x8xf32>
    %38 = arith.mulf %35, %37 : vector<1x8xf32>
    %39 = vector.broadcast %36 : f32 to vector<1x8xf32>
    %40 = arith.subf %39, %38 : vector<1x8xf32>
    %c0_17 = arith.constant 0 : index
    %c0_18 = arith.constant 0 : index
    %41 = vector.load %arg3[%c0_17, %c0_18] : memref<1x8xf32, #tpu.memory_space<vmem>>, vector<1x8xf32>
    tpu.vector_store %arg3[%c0_17, %c0_18], %40 {strides = array<i32>} : memref<1x8xf32, #tpu.memory_space<vmem>>, vector<1x8xf32>,
    return
  }
  func.func @transform_0(%arg0: i32) -> i32 {
    %c0_i32 = arith.constant 0 : i32
    %c0_i32_0 = arith.constant 0 : i32
    return %c0_i32 : i32
  }
  func.func @transform_1(%arg0: i32) -> (i32, i32) {
    %c0_i32 = arith.constant 0 : i32
    %c0_i32_0 = arith.constant 0 : i32
    return %c0_i32, %arg0 : i32, i32
  }
  func.func @transform_2(%arg0: i32) -> (i32, i32) {
    %c0_i32 = arith.constant 0 : i32
    %c0_i32_0 = arith.constant 0 : i32
    return %c0_i32, %arg0 : i32, i32
  }
}

</mosaic_0001>

<llo_original>
// kernel: tpu_custom_call.1
$region0: #{tpu_custom_call.1}
  #allocation0 [shape = 'u32[]', space=smem, size = 0x4, offset = 0x4, fixed_abs, tag = 'smem constant byte address 0x4 - core index']
  #allocation1 [shape = 'u32[72,128]{1,0:T(1,128)}', space=vmem, size = 0x9000, scoped, tag = 'internal scratch']
  #allocation2 [shape = 's32[16,8]{1,0:T(8,128)}', space=vmem, size = 0x2000, scoped, tag = 'scratch operand']
  #allocation3 [shape = 'f32[1]{0:T(128)S(6)}', space=smem, size = 0x200, scoped, tag = 'scoped memory for tpu_custom_call.1']
  %s0 = inlined_call_operand.<no memory space> [shape: f32[1], index: 0, kind: input, shape index: {}]
  %s1 = inlined_call_operand.vmem [shape: f32[16,8], index: 1, kind: input, shape index: {}]
  %s2 = inlined_call_operand.hbm [shape: f32[1,8], index: 2, kind: output, shape index: {}]
  %s3 = sld [smem:[#allocation0]]
  $region25: #{tpu_custom_call.1} parent=0
    _
  %s5 = ssub.s32 1, %s3
  %s6 = scalar_select 0, %s5, %s3
  %7 = sst [smem:[#allocation3]] %s0
  $region1: #{tpu_custom_call.1} parent=0
    #allocation4 [shape = 'u8[512]{0}', space=vmem, size = 0x400, scoped, tag = 'output window, operand 0, single buffered']
    #allocation5 [shape = 's32[1]{0}', space=sflag, size = 0x4, scoped, tag = 'scoped memory for tpu_custom_call.1']
    %8 = vsyncpa [#allocation5], 0
    // Predicated region
    $region2: #{tpu_custom_call.1} parent=1 // pred_check
      _
    $region3: #{tpu_custom_call.1} parent=1 // pred_check_branch
      %10 = sbr.rel (0) target = $region5
    $region4: #{tpu_custom_call.1} parent=1 // pred_region
      _
    $region5: #{tpu_custom_call.1} parent=1 // pred_fallthru
      _
    // Predicated region
    $region6: #{tpu_custom_call.1} parent=1 // pred_check
      _
    $region7: #{tpu_custom_call.1} parent=1 // pred_check_branch
      %12 = sbr.rel (0) target = $region9
    $region8: #{tpu_custom_call.1} parent=1 // pred_region
      _
    $region9: #{tpu_custom_call.1} parent=1 // pred_fallthru
      _
    %v13 = vld [vmem:[%s1] sm:$0xff]
    %v14 = vld [vmem:[%s1 + $0x8] sm:$0xff]
    %vm17 = vcmp.ge.s32.totalorder %v13, 0
    %vm18 = vcmp.ge.s32.totalorder %v14, 0
    %v19 = vsub.s32 2147483648, %v13
    %v20 = vsub.s32 2147483648, %v14
    %v21 = vsel %vm17, %v13, %v19
    %v22 = vsel %vm18, %v14, %v20
    %vm23 = vcmask 64512
    %24 = vst.msk [vmem:[#allocation2] sm:$0xff] %vm23, %v21
    %25 = vst.msk [vmem:[#allocation2 + $0x8] sm:$0xff] %vm23, %v22
    loop: start=0, step=1, limit=32
    $region10: #{tpu_custom_call.1} parent=1 // loop_pre_header
      _
    $region11: #{tpu_custom_call.1} parent=1 // loop_header
      %s27 = sphi 0, %s31
      %p28 = scmp.ge.s32.totalorder %s27, 32
      %v32 = vphi 2147483648, %v58
      %v33 = vphi 2147483647, %v59
    $region12: #{tpu_custom_call.1} parent=1 // loop_header_branch
      %30 = sbr.rel (%p28) target = $region16
    $region13: #{tpu_custom_call.1} parent=1 // loop_body
      %v34 = vshra.s32 %v32, 1
      %v35 = vshra.s32 %v33, 1
      %v36 = vadd.s32 %v34, %v35
      %v37 = vand.u32 %v32, %v33
      %v38 = vand.u32 %v37, 1
      %v39 = vadd.s32 %v36, %v38
      %v40 = vld [vmem:[#allocation2] sm:$0xff]
      %v41 = vld [vmem:[#allocation2 + $0x8] sm:$0xff]
      %vm42 = vcmp.le.s32.totalorder %v40, %v39
      %vm43 = vcmp.le.s32.totalorder %v41, %v39
      %v44 = vsel %vm42, 1, 0
      %v45 = vsel %vm43, 1, 0
      %v46 = vcvt.s32.f32 %v44
      %v47 = vcvt.s32.f32 %v45
      %v48 = vsel %vm23, %v46, 0.0
      %v49 = vsel %vm23, %v47, 0.0
      %v50 = vadd.f32 %v48, %v49
      %v51 = vrot.slane %v50, 4
      %v52 = vadd.f32 %v50, %v51
      %v53 = vrot.slane %v52, 2
      %v54 = vadd.f32 %v52, %v53
      %v55 = vrot.slane %v54, 1
      %v56 = vadd.f32 %v54, %v55
      %vm57 = vcmp.ge.f32.partialorder %v56, 2.0
      %v58 = vsel %vm57, %v32, %v39
      %v59 = vsel %vm57, %v39, %v33
    $region14: #{tpu_custom_call.1} parent=1 // loop_footer
      %s31 = sadd.s32 1, %s27
    $region15: #{tpu_custom_call.1} parent=1 // loop_footer_branch
      %26 = sbr.rel target = $region11
    $region16: #{tpu_custom_call.1} parent=1 // loop_exit
      _
    %v60 = vld [vmem:[%s1] sm:$0xff]
    %v61 = vld [vmem:[%s1 + $0x8] sm:$0xff]
    %v62 = vld [vmem:[#allocation2] sm:$0xff]
    %v63 = vld [vmem:[#allocation2 + $0x8] sm:$0xff]
    %vm64 = vcmp.lt.s32.totalorder %v62, %v33
    %vm65 = vcmp.lt.s32.totalorder %v63, %v33
    %v66 = vsel %vm64, 1, 0
    %v67 = vsel %vm65, 1, 0
    %v68 = vcvt.s32.f32 %v66
    %v69 = vcvt.s32.f32 %v67
    %v70 = vsel %vm23, %v68, 0.0
    %v71 = vsel %vm23, %v69, 0.0
    %v72 = vadd.f32 %v70, %v71
    %v73 = vrot.slane %v72, 4
    %v74 = vadd.f32 %v72, %v73
    %v75 = vrot.slane %v74, 2
    %v76 = vadd.f32 %v74, %v75
    %v77 = vrot.slane %v76, 1
    %v78 = vadd.f32 %v76, %v77
    %v79 = vsel %vm64, %v60, 0.0
    %v80 = vsel %vm65, %v61, 0.0
    %v81 = vsel %vm23, %v79, 0.0
    %v82 = vsel %vm23, %v80, 0.0
    %v83 = vadd.f32 %v81, %v82
    %v84 = vrot.slane %v83, 4
    %v85 = vadd.f32 %v83, %v84
    %v86 = vrot.slane %v85, 2
    %v87 = vadd.f32 %v85, %v86
    %v88 = vrot.slane %v87, 1
    %v89 = vadd.f32 %v87, %v88
    %vm90 = vcmp.ge.s32.totalorder %v33, 0
    %v91 = vsub.s32 2147483648, %v33
    %v92 = vsel %vm90, %v33, %v91
    %v94 = vsub.f32 2.0, %v78
    %v95 = vmul.f32 %v94, %v92
    %v96 = vadd.f32 %v89, %v95
    %s97 = sld [smem:[#allocation3]]
    %v98 = vmul.f32 %v96, 0.5
    %v99 = vstv %s97
    %v100 = vsub.f32 %v99, %v98
    %vm101 = vcmask 57344
    %102 = vst.msk [vmem:[#allocation4] sm:$0x1] %vm101, %v100
    // Predicated region
    $region17: #{tpu_custom_call.1} parent=1 // pred_check
      _
    $region18: #{tpu_custom_call.1} parent=1 // pred_check_branch
      %104 = sbr.rel (0) target = $region20
    $region19: #{tpu_custom_call.1} parent=1 // pred_region
      %106 = vsyncadd [#allocation5], 0
      %s108 = sshll.u32 [#allocation4], 4
      %s109 = int_to_ptr.vmem [resolvable:$true] %s108
      %s110 = sshll.u32 %s2, 4
      %s111 = int_to_ptr.hbm [resolvable:$true] %s110
      %113 = dma.vmem_to_hbm [thread:$0]  %s109, 16, %s111, [#allocation5]
    $region20: #{tpu_custom_call.1} parent=1 // pred_fallthru
      _
    // Predicated region
    $region21: #{tpu_custom_call.1} parent=1 // pred_check
      _
    $region22: #{tpu_custom_call.1} parent=1 // pred_check_branch
      %115 = sbr.rel (0) target = $region24
    $region23: #{tpu_custom_call.1} parent=1 // pred_region
      %117 = dma.done [#allocation5], 16
    $region24: #{tpu_custom_call.1} parent=1 // pred_fallthru
      _
    %118 = vsyncpa [#allocation5], 1

</llo_original>
